<compile_context>
chip_gen: v7x
topology: tpu7x:2x2x1
jax: 0.10.0
libtpu: 0.0.40
codegen_flags: <defaults>
</compile_context>

<pallas_src>
import math
import functools

import jax
import jax.numpy as jnp
from jax import lax
from jax.experimental import pallas as pl
from jax.experimental.pallas import tpu as pltpu


# ---------------------------------------------------------------------------
# Generation-aware budgeting / tile selection
# ---------------------------------------------------------------------------

def _vmem_budget():
    """Returns (vmem_limit cap, per-block target bytes) for this TPU gen."""
    try:
        phys = int(pltpu.get_tpu_info().vmem_capacity_bytes)
    except Exception:
        phys = 128 << 20
    if phys <= (64 << 20) + (1 << 20):        # v7x-class core: 64 MiB VMEM
        return 48 << 20, 4 << 20
    return 96 << 20, 8 << 20                  # v5e / v6e: 128 MiB VMEM


def _min_sublane(dtype):
    isz = jnp.dtype(dtype).itemsize
    if isz >= 4:
        return 8
    if isz == 2:
        return 16
    return 32


def _pick_tiles(B, C, HW, dtype, mode, K, target_bytes):
    """Pick (TC, TB).  TB == B -> fused single pass; TB < B -> two-pass."""
    isz = jnp.dtype(dtype).itemsize
    base = _min_sublane(dtype)
    per_ch = B * HW * isz                     # bytes per channel (full batch)

    if C % base == 0:
        cand = [t for t in range(base, C + 1, base) if C % t == 0]
        cand.sort(reverse=True)
    else:
        cand = [C]
    # prefer >=2 channel grid steps so v7x's two TensorCores both get work
    multi = [t for t in cand if C // t >= 2]
    ordered = multi + [t for t in cand if t not in multi]

    for tc in ordered:                        # fused path if a block fits
        if tc * per_ch <= target_bytes:
            return tc, B

    tc = cand[-1]                             # smallest channel tile
    if mode == "masked":
        # TODO(synk): masked chunking (chunk boundaries crossing image
        # boundaries) is not tiled over the batch axis; rare / small shapes.
        return tc, B

    step = (B // K) if mode == "inter" else 1  # keep whole chunks per tile
    per_img = tc * HW * isz
    tb_cand = [t for t in range(step, B + 1, step) if B % t == 0]
    tb_cand.sort(reverse=True)
    tb = tb_cand[-1]
    for t in tb_cand:
        if t < B and t * per_img <= target_bytes:
            tb = t
            break
    return tc, tb


def _vmem_limit(cap, blk_bytes, blk_elems):
    # 2x in + 2x out (double-buffered) + f32 working set + params/stats slack
    need = 4 * blk_bytes + 2 * blk_elems * 4 + (4 << 20)
    return int(min(cap, max(32 << 20, need)))


def _scale_fix(L):
    return (0.5 * 0.35 * (1.0 + (math.pi * math.log(4.0)) ** 0.5)
            / (2.0 * math.log(L)) ** 0.5)


# ---------------------------------------------------------------------------
# Kernels (NCHW path: channels on sublanes, H*W on lanes)
# ---------------------------------------------------------------------------

def _rangebn_fused_kernel(x_ref, w_ref, b_ref, out_ref, mean_ref, scale_ref, *,
                          mode, K, L, scale_fix, eps):
    """Single-pass stats + normalize for one channel tile.  x: (B, TC, HW)."""
    B, TC, HW = x_ref.shape
    N = B * HW
    f32 = jnp.float32

    if mode == "global":                      # K == 1
        x = x_ref[...].astype(f32)
        mean = jnp.sum(jnp.sum(x, axis=2, keepdims=True), axis=0) * (1.0 / N)
        mean_max = jnp.max(jnp.max(x, axis=2, keepdims=True), axis=0)
        mean_min = jnp.min(jnp.min(x, axis=2, keepdims=True), axis=0)
    elif mode == "intra":                     # chunks nest inside images
        m = HW // L
        ssum = jnp.zeros((TC, 1), f32)
        smax = jnp.zeros((TC, 1), f32)
        smin = jnp.zeros((TC, 1), f32)
        for j in range(m):                    # static loop, per-slice upcast
            blk = x_ref[:, :, pl.ds(j * L, L)].astype(f32)       # (B, TC, L)
            ssum = ssum + jnp.sum(jnp.sum(blk, axis=2, keepdims=True), axis=0)
            smax = smax + jnp.sum(jnp.max(blk, axis=2, keepdims=True), axis=0)
            smin = smin + jnp.sum(jnp.min(blk, axis=2, keepdims=True), axis=0)
        mean = ssum * (1.0 / N)
        mean_max = smax * (1.0 / K)
        mean_min = smin * (1.0 / K)
    elif mode == "inter":                     # chunks = groups of whole images
        p = B // K
        ssum = jnp.zeros((TC, 1), f32)
        smax = jnp.zeros((TC, 1), f32)
        smin = jnp.zeros((TC, 1), f32)
        for k in range(K):
            blk = x_ref[pl.ds(k * p, p), :, :].astype(f32)        # (p, TC, HW)
            ssum = ssum + jnp.sum(jnp.sum(blk, axis=2, keepdims=True), axis=0)
            smax = smax + jnp.max(jnp.max(blk, axis=2, keepdims=True), axis=0)
            smin = smin + jnp.min(jnp.min(blk, axis=2, keepdims=True), axis=0)
        mean = ssum * (1.0 / N)
        mean_max = smax * (1.0 / K)
        mean_min = smin * (1.0 / K)
    else:                                     # "masked": irregular boundaries
        x = x_ref[...].astype(f32)
        mean = jnp.sum(jnp.sum(x, axis=2, keepdims=True), axis=0) * (1.0 / N)
        cid = (lax.broadcasted_iota(jnp.int32, (B, 1, HW), 0) * HW
               + lax.broadcasted_iota(jnp.int32, (B, 1, HW), 2)) // L
        smax = jnp.zeros((TC, 1), f32)
        smin = jnp.zeros((TC, 1), f32)
        for k in range(K):
            sel = cid == k                                        # (B, 1, HW)
            smax = smax + jnp.max(jnp.max(jnp.where(sel, x, -jnp.inf),
                                          axis=2, keepdims=True), axis=0)
            smin = smin + jnp.min(jnp.min(jnp.where(sel, x, jnp.inf),
                                          axis=2, keepdims=True), axis=0)
        mean_max = smax * (1.0 / K)
        mean_min = smin * (1.0 / K)

    scale = 1.0 / ((mean_max - mean_min) * scale_fix + eps)       # (TC, 1)
    mean_ref[...] = mean
    scale_ref[...] = scale

    # fused affine: out = x * a + b'  (evaluated in the output dtype)
    a = scale * w_ref[...].astype(f32)
    bp = b_ref[...].astype(f32) - mean * a
    if out_ref.dtype == jnp.float32:
        out_ref[...] = x_ref[...].astype(f32) * a[None, :, :] + bp[None, :, :]
    else:
        a_c = a.astype(out_ref.dtype)
        bp_c = bp.astype(out_ref.dtype)
        out_ref[...] = x_ref[...] * a_c[None, :, :] + bp_c[None, :, :]


def _rangebn_stats_kernel(x_ref, mean_ref, scale_ref, ssum, smax, smin, *,
                          mode, L, p_img, k_total, n_total, scale_fix, eps):
    """Pass 1 of the two-pass path: accumulate stats over batch tiles."""
    TB, TC, HW = x_ref.shape
    f32 = jnp.float32
    bstep = pl.program_id(1)

    @pl.when(bstep == 0)
    def _():
        ssum[...] = jnp.zeros(ssum.shape, f32)
        if mode == "global":
            smax[...] = jnp.full(smax.shape, -jnp.inf, f32)
            smin[...] = jnp.full(smin.shape, jnp.inf, f32)
        else:
            smax[...] = jnp.zeros(smax.shape, f32)
            smin[...] = jnp.zeros(smin.shape, f32)

    if mode == "global":
        x = x_ref[...].astype(f32)
        ssum[...] += jnp.sum(jnp.sum(x, axis=2, keepdims=True), axis=0)
        smax[...] = jnp.maximum(
            smax[...], jnp.max(jnp.max(x, axis=2, keepdims=True), axis=0))
        smin[...] = jnp.minimum(
            smin[...], jnp.min(jnp.min(x, axis=2, keepdims=True), axis=0))
    elif mode == "intra":
        m = HW // L
        psum = jnp.zeros((TC, 1), f32)
        pmax = jnp.zeros((TC, 1), f32)
        pmin = jnp.zeros((TC, 1), f32)
        for j in range(m):
            blk = x_ref[:, :, pl.ds(j * L, L)].astype(f32)        # (TB, TC, L)
            psum = psum + jnp.sum(jnp.sum(blk, axis=2, keepdims=True), axis=0)
            pmax = pmax + jnp.sum(jnp.max(blk, axis=2, keepdims=True), axis=0)
            pmin = pmin + jnp.sum(jnp.min(blk, axis=2, keepdims=True), axis=0)
        ssum[...] += psum
        smax[...] += pmax
        smin[...] += pmin
    else:  # "inter": TB is a multiple of p_img (images per chunk)
        nck = TB // p_img
        psum = jnp.zeros((TC, 1), f32)
        pmax = jnp.zeros((TC, 1), f32)
        pmin = jnp.zeros((TC, 1), f32)
        for c in range(nck):
            blk = x_ref[pl.ds(c * p_img, p_img), :, :].astype(f32)
            psum = psum + jnp.sum(jnp.sum(blk, axis=2, keepdims=True), axis=0)
            pmax = pmax + jnp.max(jnp.max(blk, axis=2, keepdims=True), axis=0)
            pmin = pmin + jnp.min(jnp.min(blk, axis=2, keepdims=True), axis=0)
        ssum[...] += psum
        smax[...] += pmax
        smin[...] += pmin

    @pl.when(bstep == pl.num_programs(1) - 1)
    def _():
        mean = ssum[...] * (1.0 / n_total)
        if mode == "global":
            rng = smax[...] - smin[...]
        else:
            rng = (smax[...] - smin[...]) * (1.0 / k_total)
        mean_ref[...] = mean
        scale_ref[...] = 1.0 / (rng * scale_fix + eps)


def _rangebn_apply_kernel(x_ref, mean_ref, scale_ref, w_ref, b_ref, out_ref):
    """Normalize + affine with precomputed stats.  x/out: (TB, TC, HW)."""
    f32 = jnp.float32
    a = scale_ref[...].astype(f32) * w_ref[...].astype(f32)       # (TC, 1)
    bp = b_ref[...].astype(f32) - mean_ref[...].astype(f32) * a
    if out_ref.dtype == jnp.float32:
        out_ref[...] = x_ref[...].astype(f32) * a[None, :, :] + bp[None, :, :]
    else:
        out_ref[...] = (x_ref[...] * a.astype(out_ref.dtype)[None, :, :]
                        + bp.astype(out_ref.dtype)[None, :, :])


# ---------------------------------------------------------------------------
# Lane-dense kernels for 2-D / 1x1-spatial inputs: x is (B, C), C on lanes
# ---------------------------------------------------------------------------

def _rangebn2d_train_kernel(x_ref, w_ref, b_ref, out_ref, mean_ref, scale_ref,
                            *, K, L, scale_fix, eps):
    B, C = x_ref.shape
    f32 = jnp.float32
    ssum = jnp.zeros((1, C), f32)
    smax = jnp.zeros((1, C), f32)
    smin = jnp.zeros((1, C), f32)
    for k in range(K):                         # chunks = consecutive batch rows
        blk = x_ref[pl.ds(k * L, L), :].astype(f32)               # (L, C)
        ssum = ssum + jnp.sum(blk, axis=0, keepdims=True)
        smax = smax + jnp.max(blk, axis=0, keepdims=True)
        smin = smin + jnp.min(blk, axis=0, keepdims=True)
    mean = ssum * (1.0 / B)
    scale = 1.0 / ((smax - smin) * (scale_fix / K) + eps)
    mean_ref[...] = mean
    scale_ref[...] = scale
    a = scale * w_ref[...].astype(f32)
    bp = b_ref[...].astype(f32) - mean * a
    if out_ref.dtype == jnp.float32:
        out_ref[...] = x_ref[...].astype(f32) * a + bp
    else:
        out_ref[...] = x_ref[...] * a.astype(out_ref.dtype) + bp.astype(out_ref.dtype)


def _rangebn2d_apply_kernel(x_ref, mean_ref, scale_ref, w_ref, b_ref, out_ref):
    f32 = jnp.float32
    a = scale_ref[...].astype(f32) * w_ref[...].astype(f32)       # (1, C)
    bp = b_ref[...].astype(f32) - mean_ref[...].astype(f32) * a
    if out_ref.dtype == jnp.float32:
        out_ref[...] = x_ref[...].astype(f32) * a + bp
    else:
        out_ref[...] = x_ref[...] * a.astype(out_ref.dtype) + bp.astype(out_ref.dtype)


# ---------------------------------------------------------------------------
# Wrappers
# ---------------------------------------------------------------------------

def _forward_2d(x, weight, bias, running_mean, running_var, *,
                num_chunks, eps, momentum, training, vmem_cap):
    B, C = x.shape
    w_row = weight.reshape(1, C)
    b_row = bias.reshape(1, C)
    itemsize = jnp.dtype(x.dtype).itemsize
    blk = B * C * itemsize
    limit = _vmem_limit(vmem_cap, blk, B * C)
    # TODO(synk): very large (B, C) 2-D inputs would need lane/batch tiling;
    # a single whole-array lane-dense block is used here.

    full = pl.BlockSpec((B, C), lambda i: (0, 0))
    row = pl.BlockSpec((1, C), lambda i: (0, 0))

    if training:
        if num_chunks > 1 and num_chunks * (B // num_chunks) == B:
            K, L = num_chunks, B // num_chunks
        else:
            K, L = 1, B
        kernel = functools.partial(_rangebn2d_train_kernel, K=K, L=L,
                                   scale_fix=_scale_fix(L), eps=eps)
        out, mean_row, scale_row = pl.pallas_call(
            kernel,
            out_shape=(jax.ShapeDtypeStruct((B, C), x.dtype),
                       jax.ShapeDtypeStruct((1, C), jnp.float32),
                       jax.ShapeDtypeStruct((1, C), jnp.float32)),
            grid=(1,),
            in_specs=[full, row, row],
            out_specs=(full, row, row),
            compiler_params=pltpu.CompilerParams(vmem_limit_bytes=limit),
        )(x, w_row, b_row)
        mean_c = mean_row[0]
        scale_c = scale_row[0]
        new_rm = running_mean * momentum + mean_c * (1.0 - momentum)
        new_rv = running_var * momentum + scale_c * (1.0 - momentum)
    else:
        out = pl.pallas_call(
            _rangebn2d_apply_kernel,
            out_shape=jax.ShapeDtypeStruct((B, C), x.dtype),
            grid=(1,),
            in_specs=[full, row, row, row, row],
            out_specs=full,
            compiler_params=pltpu.CompilerParams(vmem_limit_bytes=limit),
        )(x, running_mean.reshape(1, C), running_var.reshape(1, C), w_row, b_row)
        new_rm, new_rv = running_mean, running_var
    return out, new_rm, new_rv


def range_bn_forward(x, weight, bias, running_mean, running_var, *,
                     num_chunks=16, eps=1e-5, momentum=0.1, training=True,
                     _max_block_bytes=None):
    """Returns (out, new_running_mean, new_running_var).

    NOTE: as in the original RangeBN, `running_var` stores the per-channel
    *scale* (1 / robust range estimate), not a variance.
    """
    cap, target = _vmem_budget()
    if _max_block_bytes is not None:
        target = int(_max_block_bytes)

    # Lane-dense path for 2-D inputs (and 4-D inputs with 1x1 spatial dims,
    # which the original module squeezes back to 2-D anyway).
    if x.ndim == 2:
        return _forward_2d(x, weight, bias, running_mean, running_var,
                           num_chunks=num_chunks, eps=eps, momentum=momentum,
                           training=training, vmem_cap=cap)
    if x.ndim == 4 and x.shape[2] == 1 and x.shape[3] == 1:
        return _forward_2d(x.reshape(x.shape[0], x.shape[1]), weight, bias,
                           running_mean, running_var, num_chunks=num_chunks,
                           eps=eps, momentum=momentum, training=training,
                           vmem_cap=cap)

    B, C, H, W = x.shape
    HW = H * W
    N = B * HW

    x_r = x.reshape(B, C, HW)                  # free, layout-preserving
    w_col = weight.reshape(C, 1)
    b_col = bias.reshape(C, 1)
    itemsize = jnp.dtype(x.dtype).itemsize

    if training:
        if num_chunks > 1 and num_chunks * (N // num_chunks) == N:
            K, L = num_chunks, N // num_chunks
            if K % B == 0:
                mode = "intra"       # chunks nest inside images (L | H*W)
            elif B % K == 0:
                mode = "inter"       # chunks are groups of whole images
            else:
                mode = "masked"      # chunk boundaries cross image boundaries
        else:
            K, L, mode = 1, N, "global"
        sfix = _scale_fix(L)

        TC, TB = _pick_tiles(B, C, HW, x.dtype, mode, K, target)
        blk = TB * TC * HW * itemsize
        limit = _vmem_limit(cap, blk, TB * TC * HW)

        if TB == B:
            # fused single pass: stats + normalize per channel tile
            kernel = functools.partial(_rangebn_fused_kernel, mode=mode, K=K,
                                       L=L, scale_fix=sfix, eps=eps)
            out_r, mean_col, scale_col = pl.pallas_call(
                kernel,
                out_shape=(jax.ShapeDtypeStruct((B, C, HW), x.dtype),
                           jax.ShapeDtypeStruct((C, 1), jnp.float32),
                           jax.ShapeDtypeStruct((C, 1), jnp.float32)),
                grid=(C // TC,),
                in_specs=[pl.BlockSpec((B, TC, HW), lambda c: (0, c, 0)),
                          pl.BlockSpec((TC, 1), lambda c: (c, 0)),
                          pl.BlockSpec((TC, 1), lambda c: (c, 0))],
                out_specs=(pl.BlockSpec((B, TC, HW), lambda c: (0, c, 0)),
                           pl.BlockSpec((TC, 1), lambda c: (c, 0)),
                           pl.BlockSpec((TC, 1), lambda c: (c, 0))),
                compiler_params=pltpu.CompilerParams(
                    dimension_semantics=("parallel",),
                    vmem_limit_bytes=limit),
            )(x_r, w_col, b_col)
        else:
            # two-pass path for blocks too large for VMEM: stats, then apply
            p_img = (B // K) if mode == "inter" else 1
            stats = functools.partial(_rangebn_stats_kernel, mode=mode, L=L,
                                      p_img=p_img, k_total=K, n_total=N,
                                      scale_fix=sfix, eps=eps)
            mean_col, scale_col = pl.pallas_call(
                stats,
                out_shape=(jax.ShapeDtypeStruct((C, 1), jnp.float32),
                           jax.ShapeDtypeStruct((C, 1), jnp.float32)),
                grid=(C // TC, B // TB),
                in_specs=[pl.BlockSpec((TB, TC, HW), lambda c, b: (b, c, 0))],
                out_specs=(pl.BlockSpec((TC, 1), lambda c, b: (c, 0)),
                           pl.BlockSpec((TC, 1), lambda c, b: (c, 0))),
                scratch_shapes=[pltpu.VMEM((TC, 1), jnp.float32)] * 3,
                compiler_params=pltpu.CompilerParams(
                    dimension_semantics=("parallel", "arbitrary"),
                    vmem_limit_bytes=limit),
            )(x_r)
            out_r = pl.pallas_call(
                _rangebn_apply_kernel,
                out_shape=jax.ShapeDtypeStruct((B, C, HW), x.dtype),
                grid=(C // TC, B // TB),
                in_specs=[pl.BlockSpec((TB, TC, HW), lambda c, b: (b, c, 0)),
                          pl.BlockSpec((TC, 1), lambda c, b: (c, 0)),
                          pl.BlockSpec((TC, 1), lambda c, b: (c, 0)),
                          pl.BlockSpec((TC, 1), lambda c, b: (c, 0)),
                          pl.BlockSpec((TC, 1), lambda c, b: (c, 0))],
                out_specs=pl.BlockSpec((TB, TC, HW), lambda c, b: (b, c, 0)),
                compiler_params=pltpu.CompilerParams(
                    dimension_semantics=("parallel", "parallel"),
                    vmem_limit_bytes=limit),
            )(x_r, mean_col, scale_col, w_col, b_col)

        mean_c = mean_col[:, 0]
        scale_c = scale_col[:, 0]
        new_rm = running_mean * momentum + mean_c * (1.0 - momentum)
        new_rv = running_var * momentum + scale_c * (1.0 - momentum)
    else:
        mean_col = running_mean.reshape(C, 1)
        scale_col = running_var.reshape(C, 1)
        new_rm, new_rv = running_mean, running_var

        TC, TB = _pick_tiles(B, C, HW, x.dtype, "global", 1, target)
        blk = TB * TC * HW * itemsize
        limit = _vmem_limit(cap, blk, TB * TC * HW)
        out_r = pl.pallas_call(
            _rangebn_apply_kernel,
            out_shape=jax.ShapeDtypeStruct((B, C, HW), x.dtype),
            grid=(C // TC, B // TB),
            in_specs=[pl.BlockSpec((TB, TC, HW), lambda c, b: (b, c, 0)),
                      pl.BlockSpec((TC, 1), lambda c, b: (c, 0)),
                      pl.BlockSpec((TC, 1), lambda c, b: (c, 0)),
                      pl.BlockSpec((TC, 1), lambda c, b: (c, 0)),
                      pl.BlockSpec((TC, 1), lambda c, b: (c, 0))],
            out_specs=pl.BlockSpec((TB, TC, HW), lambda c, b: (b, c, 0)),
            compiler_params=pltpu.CompilerParams(
                dimension_semantics=("parallel", "parallel"),
                vmem_limit_bytes=limit),
        )(x_r, mean_col, scale_col, w_col, b_col)

    out = out_r.reshape(B, C, H, W)
    return out, new_rm, new_rv


# ---------------------------------------------------------------------------
# Pure-JAX reference (mirrors the PyTorch training-mode forward)
# ---------------------------------------------------------------------------

def _reference_train(x, weight, bias, num_chunks=16, eps=1e-5):
    B, C, H, W = x.shape
    N = B * H * W
    y = jnp.transpose(x, (1, 0, 2, 3)).reshape(C, -1)
    if C * num_chunks * (N // num_chunks) == B * C * H * W:
        y = y.reshape(C, num_chunks, N // num_chunks)
    else:
        y = y.reshape(C, 1, N)
    L = y.shape[-1]
    mean_max = jnp.mean(jnp.max(y, axis=-1), axis=-1)
    mean_min = jnp.mean(jnp.min(y, axis=-1), axis=-1)
    mean = jnp.mean(y.reshape(C, -1), axis=-1)
    scale = 1.0 / ((mean_max - mean_min) * _scale_fix(L) + eps)
    out = (x - mean[None, :, None, None]) * scale[None, :, None, None]
    out = out * weight[None, :, None, None] + bias[None, :, None, None]
    return out, mean, scale


# ---------------------------------------------------------------------------

if __name__ == "__main__":
    key = jax.random.PRNGKey(0)
    k1, k2, k3, k4, k5, k6, k7, k8 = jax.random.split(key, 8)

    # ---- 1) fused "intra" path: B=2, C=4, H=W=16 ----------------------------
    B, C, H, W = 2, 4, 16, 16
    x = jax.random.normal(k1, (B, C, H, W), dtype=jnp.float32)
    weight = jax.random.uniform(k2, (C,), dtype=jnp.float32)   # reset_params(): uniform_
    bias = jnp.zeros((C,), dtype=jnp.float32)                  # reset_params(): zero_
    rm = jnp.zeros((C,), dtype=jnp.float32)
    rv = jnp.zeros((C,), dtype=jnp.float32)

    out, nrm, nrv = range_bn_forward(x, weight, bias, rm, rv, training=True)
    jax.block_until_ready(out)
    ref_out, ref_mean, ref_scale = _reference_train(x, weight, bias)
    assert out.shape == (B, C, H, W)
    assert jnp.allclose(out, ref_out, atol=1e-4, rtol=1e-4), "train mismatch"
    assert jnp.allclose(nrm, 0.1 * rm + 0.9 * ref_mean, atol=1e-4, rtol=1e-4)
    assert jnp.allclose(nrv, 0.1 * rv + 0.9 * ref_scale, atol=1e-4, rtol=1e-4)

    # eval mode through the batch-blocked apply kernel
    out_eval, _, _ = range_bn_forward(x, weight, bias, nrm, nrv, training=False)
    jax.block_until_ready(out_eval)
    ref_eval = ((x - nrm[None, :, None, None]) * nrv[None, :, None, None]
                * weight[None, :, None, None] + bias[None, :, None, None])
    assert jnp.allclose(out_eval, ref_eval, atol=1e-4, rtol=1e-4), "eval mismatch"

    # ---- 2) fused "inter" path: chunks = groups of whole images -------------
    B2, C2, H2, W2 = 32, 8, 2, 2
    x2 = jax.random.normal(k3, (B2, C2, H2, W2), dtype=jnp.float32)
    w2 = jax.random.uniform(k4, (C2,), dtype=jnp.float32)
    b2 = jax.random.normal(k4, (C2,), dtype=jnp.float32) * 0.1
    z2 = jnp.zeros((C2,), jnp.float32)
    out2, _, _ = range_bn_forward(x2, w2, b2, z2, z2, training=True)
    jax.block_until_ready(out2)
    ref2, _, _ = _reference_train(x2, w2, b2)
    assert jnp.allclose(out2, ref2, atol=1e-4, rtol=1e-4), "inter mismatch"

    # ---- 3) forced two-pass "intra" path (batch-tiled stats + apply) --------
    out3, nrm3, nrv3 = range_bn_forward(x, weight, bias, rm, rv, training=True,
                                        _max_block_bytes=4096)
    jax.block_until_ready(out3)
    assert jnp.allclose(out3, ref_out, atol=1e-4, rtol=1e-4), "2-pass intra mismatch"
    assert jnp.allclose(nrm3, 0.9 * ref_mean, atol=1e-4, rtol=1e-4)
    assert jnp.allclose(nrv3, 0.9 * ref_scale, atol=1e-4, rtol=1e-4)

    # ---- 4) forced two-pass "inter" path -------------------------------------
    out4, _, _ = range_bn_forward(x2, w2, b2, z2, z2, training=True,
                                  _max_block_bytes=1024)
    jax.block_until_ready(out4)
    assert jnp.allclose(out4, ref2, atol=1e-4, rtol=1e-4), "2-pass inter mismatch"

    # ---- 5) "masked" path (chunk boundaries cross image boundaries) ---------
    B5, C5, H5, W5 = 3, 4, 4, 4
    x5 = jax.random.normal(k5, (B5, C5, H5, W5), dtype=jnp.float32)
    w5 = jax.random.uniform(k6, (C5,), dtype=jnp.float32)
    b5 = jnp.zeros((C5,), dtype=jnp.float32)
    z5 = jnp.zeros((C5,), jnp.float32)
    out5, _, _ = range_bn_forward(x5, w5, b5, z5, z5, training=True)
    jax.block_until_ready(out5)
    ref5, _, _ = _reference_train(x5, w5, b5)
    assert jnp.allclose(out5, ref5, atol=1e-4, rtol=1e-4), "masked mismatch"

    # ---- 6) bf16 activations (bf16 affine epilogue, f32 stats) --------------
    B6, C6, H6, W6 = 2, 32, 8, 8
    x6 = jax.random.normal(k7, (B6, C6, H6, W6), dtype=jnp.float32).astype(jnp.bfloat16)
    w6 = jax.random.uniform(k8, (C6,), dtype=jnp.float32)
    b6 = jnp.zeros((C6,), dtype=jnp.float32)
    z6 = jnp.zeros((C6,), jnp.float32)
    out6, _, _ = range_bn_forward(x6, w6, b6, z6, z6, training=True)
    jax.block_until_ready(out6)
    ref6, _, _ = _reference_train(x6.astype(jnp.float32), w6, b6)
    assert out6.dtype == jnp.bfloat16
    assert jnp.allclose(out6.astype(jnp.float32), ref6, atol=1e-1, rtol=1e-1), \
        "bf16 mismatch"

    # ---- 7) lane-dense 2-D input path ----------------------------------------
    B7, C7 = 32, 32
    x7 = jax.random.normal(k1, (B7, C7), dtype=jnp.float32)
    w7 = jax.random.uniform(k2, (C7,), dtype=jnp.float32)
    b7 = jax.random.normal(k3, (C7,), dtype=jnp.float32) * 0.1
    z7 = jnp.zeros((C7,), jnp.float32)
    out7, nrm7, nrv7 = range_bn_forward(x7, w7, b7, z7, z7, training=True)
    jax.block_until_ready(out7)
    ref7, ref7_mean, ref7_scale = _reference_train(x7[:, :, None, None], w7, b7)
    assert out7.shape == (B7, C7)
    assert jnp.allclose(out7, ref7[:, :, 0, 0], atol=1e-4, rtol=1e-4), "2D mismatch"
    assert jnp.allclose(nrm7, 0.9 * ref7_mean, atol=1e-4, rtol=1e-4)
    out7e, _, _ = range_bn_forward(x7, w7, b7, nrm7, nrv7, training=False)
    jax.block_until_ready(out7e)
    ref7e = (x7 - nrm7[None, :]) * nrv7[None, :] * w7[None, :] + b7[None, :]
    assert jnp.allclose(out7e, ref7e, atol=1e-4, rtol=1e-4), "2D eval mismatch"

    print("KERNEL_OK")
</pallas_src>

<mosaic_0001>
module attributes {stable_mosaic.version = 11 : i64} {
  func.func @_rangebn_fused_kernel(%arg0: i32, %arg1: memref<2x4x256xf32, #tpu.memory_space<vmem>>, %arg2: memref<4x1xf32, #tpu.memory_space<vmem>>, %arg3: memref<4x1xf32, #tpu.memory_space<vmem>>, %arg4: memref<2x4x256xf32, #tpu.memory_space<vmem>>, %arg5: memref<4x1xf32, #tpu.memory_space<vmem>>, %arg6: memref<4x1xf32, #tpu.memory_space<vmem>>) attributes {dimension_semantics = [#tpu.dimension_semantics<parallel>], iteration_bounds = array<i64: 1>, scalar_prefetch = 0 : i64, scratch_operands = 0 : i64, tpu.core_type = #tpu.core_type<tc>, window_params = [{transform_indices = @transform_0, window_bounds = array<i64: 2, 4, 256>}, {transform_indices = @transform_1, window_bounds = array<i64: 4, 1>}, {transform_indices = @transform_2, window_bounds = array<i64: 4, 1>}, {transform_indices = @transform_3, window_bounds = array<i64: 2, 4, 256>}, {transform_indices = @transform_4, window_bounds = array<i64: 4, 1>}, {transform_indices = @transform_5, window_bounds = array<i64: 4, 1>}]} {
    %cst = arith.constant 0.000000e+00 : f32
    %0 = vector.broadcast %cst : f32 to vector<4x1xf32>
    %cst_0 = arith.constant 0.000000e+00 : f32
    %1 = vector.broadcast %cst_0 : f32 to vector<4x1xf32>
    %cst_1 = arith.constant 0.000000e+00 : f32
    %2 = vector.broadcast %cst_1 : f32 to vector<4x1xf32>
    %c0 = arith.constant 0 : index
    %c0_2 = arith.constant 0 : index
    %c0_3 = arith.constant 0 : index
    %3 = vector.load %arg1[%c0, %c0_2, %c0_3] : memref<2x4x256xf32, #tpu.memory_space<vmem>>, vector<2x4x32xf32>
    %cst_4 = arith.constant dense<0.000000e+00> : vector<2x4xf32>
    %4 = vector.multi_reduction <add>, %3, %cst_4 [2] : vector<2x4x32xf32> to vector<2x4xf32>
    %5 = vector.shape_cast %4 : vector<2x4xf32> to vector<2x4x1xf32>
    %cst_5 = arith.constant dense<0.000000e+00> : vector<4x1xf32>
    %6 = vector.multi_reduction <add>, %5, %cst_5 [0] : vector<2x4x1xf32> to vector<4x1xf32>
    %7 = arith.addf %0, %6 : vector<4x1xf32>
    %cst_6 = arith.constant dense<0xFF800000> : vector<2x4xf32>
    %8 = vector.multi_reduction <maximumf>, %3, %cst_6 [2] : vector<2x4x32xf32> to vector<2x4xf32>
    %9 = vector.shape_cast %8 : vector<2x4xf32> to vector<2x4x1xf32>
    %cst_7 = arith.constant dense<0.000000e+00> : vector<4x1xf32>
    %10 = vector.multi_reduction <add>, %9, %cst_7 [0] : vector<2x4x1xf32> to vector<4x1xf32>
    %11 = arith.addf %1, %10 : vector<4x1xf32>
    %cst_8 = arith.constant dense<0x7F800000> : vector<2x4xf32>
    %12 = vector.multi_reduction <minimumf>, %3, %cst_8 [2] : vector<2x4x32xf32> to vector<2x4xf32>
    %13 = vector.shape_cast %12 : vector<2x4xf32> to vector<2x4x1xf32>
    %cst_9 = arith.constant dense<0.000000e+00> : vector<4x1xf32>
    %14 = vector.multi_reduction <add>, %13, %cst_9 [0] : vector<2x4x1xf32> to vector<4x1xf32>
    %15 = arith.addf %2, %14 : vector<4x1xf32>
    %c0_10 = arith.constant 0 : index
    %c0_11 = arith.constant 0 : index
    %c32 = arith.constant 32 : index
    %16 = vector.load %arg1[%c0_10, %c0_11, %c32] : memref<2x4x256xf32, #tpu.memory_space<vmem>>, vector<2x4x32xf32>
    %cst_12 = arith.constant dense<0.000000e+00> : vector<2x4xf32>
    %17 = vector.multi_reduction <add>, %16, %cst_12 [2] : vector<2x4x32xf32> to vector<2x4xf32>
    %18 = vector.shape_cast %17 : vector<2x4xf32> to vector<2x4x1xf32>
    %cst_13 = arith.constant dense<0.000000e+00> : vector<4x1xf32>
    %19 = vector.multi_reduction <add>, %18, %cst_13 [0] : vector<2x4x1xf32> to vector<4x1xf32>
    %20 = arith.addf %7, %19 : vector<4x1xf32>
    %cst_14 = arith.constant dense<0xFF800000> : vector<2x4xf32>
    %21 = vector.multi_reduction <maximumf>, %16, %cst_14 [2] : vector<2x4x32xf32> to vector<2x4xf32>
    %22 = vector.shape_cast %21 : vector<2x4xf32> to vector<2x4x1xf32>
    %cst_15 = arith.constant dense<0.000000e+00> : vector<4x1xf32>
    %23 = vector.multi_reduction <add>, %22, %cst_15 [0] : vector<2x4x1xf32> to vector<4x1xf32>
    %24 = arith.addf %11, %23 : vector<4x1xf32>
    %cst_16 = arith.constant dense<0x7F800000> : vector<2x4xf32>
    %25 = vector.multi_reduction <minimumf>, %16, %cst_16 [2] : vector<2x4x32xf32> to vector<2x4xf32>
    %26 = vector.shape_cast %25 : vector<2x4xf32> to vector<2x4x1xf32>
    %cst_17 = arith.constant dense<0.000000e+00> : vector<4x1xf32>
    %27 = vector.multi_reduction <add>, %26, %cst_17 [0] : vector<2x4x1xf32> to vector<4x1xf32>
    %28 = arith.addf %15, %27 : vector<4x1xf32>
    %c0_18 = arith.constant 0 : index
    %c0_19 = arith.constant 0 : index
    %c64 = arith.constant 64 : index
    %29 = vector.load %arg1[%c0_18, %c0_19, %c64] : memref<2x4x256xf32, #tpu.memory_space<vmem>>, vector<2x4x32xf32>
    %cst_20 = arith.constant dense<0.000000e+00> : vector<2x4xf32>
    %30 = vector.multi_reduction <add>, %29, %cst_20 [2] : vector<2x4x32xf32> to vector<2x4xf32>
    %31 = vector.shape_cast %30 : vector<2x4xf32> to vector<2x4x1xf32>
    %cst_21 = arith.constant dense<0.000000e+00> : vector<4x1xf32>
    %32 = vector.multi_reduction <add>, %31, %cst_21 [0] : vector<2x4x1xf32> to vector<4x1xf32>
    %33 = arith.addf %20, %32 : vector<4x1xf32>
    %cst_22 = arith.constant dense<0xFF800000> : vector<2x4xf32>
    %34 = vector.multi_reduction <maximumf>, %29, %cst_22 [2] : vector<2x4x32xf32> to vector<2x4xf32>
    %35 = vector.shape_cast %34 : vector<2x4xf32> to vector<2x4x1xf32>
    %cst_23 = arith.constant dense<0.000000e+00> : vector<4x1xf32>
    %36 = vector.multi_reduction <add>, %35, %cst_23 [0] : vector<2x4x1xf32> to vector<4x1xf32>
    %37 = arith.addf %24, %36 : vector<4x1xf32>
    %cst_24 = arith.constant dense<0x7F800000> : vector<2x4xf32>
    %38 = vector.multi_reduction <minimumf>, %29, %cst_24 [2] : vector<2x4x32xf32> to vector<2x4xf32>
    %39 = vector.shape_cast %38 : vector<2x4xf32> to vector<2x4x1xf32>
    %cst_25 = arith.constant dense<0.000000e+00> : vector<4x1xf32>
    %40 = vector.multi_reduction <add>, %39, %cst_25 [0] : vector<2x4x1xf32> to vector<4x1xf32>
    %41 = arith.addf %28, %40 : vector<4x1xf32>
    %c0_26 = arith.constant 0 : index
    %c0_27 = arith.constant 0 : index
    %c96 = arith.constant 96 : index
    %42 = vector.load %arg1[%c0_26, %c0_27, %c96] : memref<2x4x256xf32, #tpu.memory_space<vmem>>, vector<2x4x32xf32>
    %cst_28 = arith.constant dense<0.000000e+00> : vector<2x4xf32>
    %43 = vector.multi_reduction <add>, %42, %cst_28 [2] : vector<2x4x32xf32> to vector<2x4xf32>
    %44 = vector.shape_cast %43 : vector<2x4xf32> to vector<2x4x1xf32>
    %cst_29 = arith.constant dense<0.000000e+00> : vector<4x1xf32>
    %45 = vector.multi_reduction <add>, %44, %cst_29 [0] : vector<2x4x1xf32> to vector<4x1xf32>
    %46 = arith.addf %33, %45 : vector<4x1xf32>
    %cst_30 = arith.constant dense<0xFF800000> : vector<2x4xf32>
    %47 = vector.multi_reduction <maximumf>, %42, %cst_30 [2] : vector<2x4x32xf32> to vector<2x4xf32>
    %48 = vector.shape_cast %47 : vector<2x4xf32> to vector<2x4x1xf32>
    %cst_31 = arith.constant dense<0.000000e+00> : vector<4x1xf32>
    %49 = vector.multi_reduction <add>, %48, %cst_31 [0] : vector<2x4x1xf32> to vector<4x1xf32>
    %50 = arith.addf %37, %49 : vector<4x1xf32>
    %cst_32 = arith.constant dense<0x7F800000> : vector<2x4xf32>
    %51 = vector.multi_reduction <minimumf>, %42, %cst_32 [2] : vector<2x4x32xf32> to vector<2x4xf32>
    %52 = vector.shape_cast %51 : vector<2x4xf32> to vector<2x4x1xf32>
    %cst_33 = arith.constant dense<0.000000e+00> : vector<4x1xf32>
    %53 = vector.multi_reduction <add>, %52, %cst_33 [0] : vector<2x4x1xf32> to vector<4x1xf32>
    %54 = arith.addf %41, %53 : vector<4x1xf32>
    %c0_34 = arith.constant 0 : index
    %c0_35 = arith.constant 0 : index
    %c128 = arith.constant 128 : index
    %55 = vector.load %arg1[%c0_34, %c0_35, %c128] : memref<2x4x256xf32, #tpu.memory_space<vmem>>, vector<2x4x32xf32>
    %cst_36 = arith.constant dense<0.000000e+00> : vector<2x4xf32>
    %56 = vector.multi_reduction <add>, %55, %cst_36 [2] : vector<2x4x32xf32> to vector<2x4xf32>
    %57 = vector.shape_cast %56 : vector<2x4xf32> to vector<2x4x1xf32>
    %cst_37 = arith.constant dense<0.000000e+00> : vector<4x1xf32>
    %58 = vector.multi_reduction <add>, %57, %cst_37 [0] : vector<2x4x1xf32> to vector<4x1xf32>
    %59 = arith.addf %46, %58 : vector<4x1xf32>
    %cst_38 = arith.constant dense<0xFF800000> : vector<2x4xf32>
    %60 = vector.multi_reduction <maximumf>, %55, %cst_38 [2] : vector<2x4x32xf32> to vector<2x4xf32>
    %61 = vector.shape_cast %60 : vector<2x4xf32> to vector<2x4x1xf32>
    %cst_39 = arith.constant dense<0.000000e+00> : vector<4x1xf32>
    %62 = vector.multi_reduction <add>, %61, %cst_39 [0] : vector<2x4x1xf32> to vector<4x1xf32>
    %63 = arith.addf %50, %62 : vector<4x1xf32>
    %cst_40 = arith.constant dense<0x7F800000> : vector<2x4xf32>
    %64 = vector.multi_reduction <minimumf>, %55, %cst_40 [2] : vector<2x4x32xf32> to vector<2x4xf32>
    %65 = vector.shape_cast %64 : vector<2x4xf32> to vector<2x4x1xf32>
    %cst_41 = arith.constant dense<0.000000e+00> : vector<4x1xf32>
    %66 = vector.multi_reduction <add>, %65, %cst_41 [0] : vector<2x4x1xf32> to vector<4x1xf32>
    %67 = arith.addf %54, %66 : vector<4x1xf32>
    %c0_42 = arith.constant 0 : index
    %c0_43 = arith.constant 0 : index
    %c160 = arith.constant 160 : index
    %68 = vector.load %arg1[%c0_42, %c0_43, %c160] : memref<2x4x256xf32, #tpu.memory_space<vmem>>, vector<2x4x32xf32>
    %cst_44 = arith.constant dense<0.000000e+00> : vector<2x4xf32>
    %69 = vector.multi_reduction <add>, %68, %cst_44 [2] : vector<2x4x32xf32> to vector<2x4xf32>
    %70 = vector.shape_cast %69 : vector<2x4xf32> to vector<2x4x1xf32>
    %cst_45 = arith.constant dense<0.000000e+00> : vector<4x1xf32>
    %71 = vector.multi_reduction <add>, %70, %cst_45 [0] : vector<2x4x1xf32> to vector<4x1xf32>
    %72 = arith.addf %59, %71 : vector<4x1xf32>
    %cst_46 = arith.constant dense<0xFF800000> : vector<2x4xf32>
    %73 = vector.multi_reduction <maximumf>, %68, %cst_46 [2] : vector<2x4x32xf32> to vector<2x4xf32>
    %74 = vector.shape_cast %73 : vector<2x4xf32> to vector<2x4x1xf32>
    %cst_47 = arith.constant dense<0.000000e+00> : vector<4x1xf32>
    %75 = vector.multi_reduction <add>, %74, %cst_47 [0] : vector<2x4x1xf32> to vector<4x1xf32>
    %76 = arith.addf %63, %75 : vector<4x1xf32>
    %cst_48 = arith.constant dense<0x7F800000> : vector<2x4xf32>
    %77 = vector.multi_reduction <minimumf>, %68, %cst_48 [2] : vector<2x4x32xf32> to vector<2x4xf32>
    %78 = vector.shape_cast %77 : vector<2x4xf32> to vector<2x4x1xf32>
    %cst_49 = arith.constant dense<0.000000e+00> : vector<4x1xf32>
    %79 = vector.multi_reduction <add>, %78, %cst_49 [0] : vector<2x4x1xf32> to vector<4x1xf32>
    %80 = arith.addf %67, %79 : vector<4x1xf32>
    %c0_50 = arith.constant 0 : index
    %c0_51 = arith.constant 0 : index
    %c192 = arith.constant 192 : index
    %81 = vector.load %arg1[%c0_50, %c0_51, %c192] : memref<2x4x256xf32, #tpu.memory_space<vmem>>, vector<2x4x32xf32>
    %cst_52 = arith.constant dense<0.000000e+00> : vector<2x4xf32>
    %82 = vector.multi_reduction <add>, %81, %cst_52 [2] : vector<2x4x32xf32> to vector<2x4xf32>
    %83 = vector.shape_cast %82 : vector<2x4xf32> to vector<2x4x1xf32>
    %cst_53 = arith.constant dense<0.000000e+00> : vector<4x1xf32>
    %84 = vector.multi_reduction <add>, %83, %cst_53 [0] : vector<2x4x1xf32> to vector<4x1xf32>
    %85 = arith.addf %72, %84 : vector<4x1xf32>
    %cst_54 = arith.constant dense<0xFF800000> : vector<2x4xf32>
    %86 = vector.multi_reduction <maximumf>, %81, %cst_54 [2] : vector<2x4x32xf32> to vector<2x4xf32>
    %87 = vector.shape_cast %86 : vector<2x4xf32> to vector<2x4x1xf32>
    %cst_55 = arith.constant dense<0.000000e+00> : vector<4x1xf32>
    %88 = vector.multi_reduction <add>, %87, %cst_55 [0] : vector<2x4x1xf32> to vector<4x1xf32>
    %89 = arith.addf %76, %88 : vector<4x1xf32>
    %cst_56 = arith.constant dense<0x7F800000> : vector<2x4xf32>
    %90 = vector.multi_reduction <minimumf>, %81, %cst_56 [2] : vector<2x4x32xf32> to vector<2x4xf32>
    %91 = vector.shape_cast %90 : vector<2x4xf32> to vector<2x4x1xf32>
    %cst_57 = arith.constant dense<0.000000e+00> : vector<4x1xf32>
    %92 = vector.multi_reduction <add>, %91, %cst_57 [0] : vector<2x4x1xf32> to vector<4x1xf32>
    %93 = arith.addf %80, %92 : vector<4x1xf32>
    %c0_58 = arith.constant 0 : index
    %c0_59 = arith.constant 0 : index
    %c224 = arith.constant 224 : index
    %94 = vector.load %arg1[%c0_58, %c0_59, %c224] : memref<2x4x256xf32, #tpu.memory_space<vmem>>, vector<2x4x32xf32>
    %cst_60 = arith.constant dense<0.000000e+00> : vector<2x4xf32>
    %95 = vector.multi_reduction <add>, %94, %cst_60 [2] : vector<2x4x32xf32> to vector<2x4xf32>
    %96 = vector.shape_cast %95 : vector<2x4xf32> to vector<2x4x1xf32>
    %cst_61 = arith.constant dense<0.000000e+00> : vector<4x1xf32>
    %97 = vector.multi_reduction <add>, %96, %cst_61 [0] : vector<2x4x1xf32> to vector<4x1xf32>
    %98 = arith.addf %85, %97 : vector<4x1xf32>
    %cst_62 = arith.constant dense<0xFF800000> : vector<2x4xf32>
    %99 = vector.multi_reduction <maximumf>, %94, %cst_62 [2] : vector<2x4x32xf32> to vector<2x4xf32>
    %100 = vector.shape_cast %99 : vector<2x4xf32> to vector<2x4x1xf32>
    %cst_63 = arith.constant dense<0.000000e+00> : vector<4x1xf32>
    %101 = vector.multi_reduction <add>, %100, %cst_63 [0] : vector<2x4x1xf32> to vector<4x1xf32>
    %102 = arith.addf %89, %101 : vector<4x1xf32>
    %cst_64 = arith.constant dense<0x7F800000> : vector<2x4xf32>
    %103 = vector.multi_reduction <minimumf>, %94, %cst_64 [2] : vector<2x4x32xf32> to vector<2x4xf32>
    %104 = vector.shape_cast %103 : vector<2x4xf32> to vector<2x4x1xf32>
    %cst_65 = arith.constant dense<0.000000e+00> : vector<4x1xf32>
    %105 = vector.multi_reduction <add>, %104, %cst_65 [0] : vector<2x4x1xf32> to vector<4x1xf32>
    %106 = arith.addf %93, %105 : vector<4x1xf32>
    %cst_66 = arith.constant 0.001953125 : f32
    %107 = vector.broadcast %cst_66 : f32 to vector<4x1xf32>
    %108 = arith.mulf %98, %107 : vector<4x1xf32>
    %cst_67 = arith.constant 6.250000e-02 : f32
    %109 = vector.broadcast %cst_67 : f32 to vector<4x1xf32>
    %110 = arith.mulf %102, %109 : vector<4x1xf32>
    %cst_68 = arith.constant 6.250000e-02 : f32
    %111 = vector.broadcast %cst_68 : f32 to vector<4x1xf32>
    %112 = arith.mulf %106, %111 : vector<4x1xf32>
    %113 = arith.subf %110, %112 : vector<4x1xf32>
    %cst_69 = arith.constant 0.205186397 : f32
    %114 = vector.broadcast %cst_69 : f32 to vector<4x1xf32>
    %115 = arith.mulf %113, %114 : vector<4x1xf32>
    %cst_70 = arith.constant 9.99999974E-6 : f32
    %116 = vector.broadcast %cst_70 : f32 to vector<4x1xf32>
    %117 = arith.addf %115, %116 : vector<4x1xf32>
    %cst_71 = arith.constant 1.000000e+00 : f32
    %118 = vector.broadcast %cst_71 : f32 to vector<4x1xf32>
    %119 = arith.divf %118, %117 : vector<4x1xf32>
    %c0_72 = arith.constant 0 : index
    %c0_73 = arith.constant 0 : index
    %120 = vector.load %arg5[%c0_72, %c0_73] : memref<4x1xf32, #tpu.memory_space<vmem>>, vector<4x1xf32>
    tpu.vector_store %arg5[%c0_72, %c0_73], %108 {strides = array<i32>} : memref<4x1xf32, #tpu.memory_space<vmem>>, vector<4x1xf32>,
    %c0_74 = arith.constant 0 : index
    %c0_75 = arith.constant 0 : index
    %121 = vector.load %arg6[%c0_74, %c0_75] : memref<4x1xf32, #tpu.memory_space<vmem>>, vector<4x1xf32>
    tpu.vector_store %arg6[%c0_74, %c0_75], %119 {strides = array<i32>} : memref<4x1xf32, #tpu.memory_space<vmem>>, vector<4x1xf32>,
    %c0_76 = arith.constant 0 : index
    %c0_77 = arith.constant 0 : index
    %122 = vector.load %arg2[%c0_76, %c0_77] : memref<4x1xf32, #tpu.memory_space<vmem>>, vector<4x1xf32>
    %123 = arith.mulf %119, %122 : vector<4x1xf32>
    %c0_78 = arith.constant 0 : index
    %c0_79 = arith.constant 0 : index
    %124 = vector.load %arg3[%c0_78, %c0_79] : memref<4x1xf32, #tpu.memory_space<vmem>>, vector<4x1xf32>
    %125 = arith.mulf %108, %123 : vector<4x1xf32>
    %126 = arith.subf %124, %125 : vector<4x1xf32>
    %c0_80 = arith.constant 0 : index
    %c0_81 = arith.constant 0 : index
    %c0_82 = arith.constant 0 : index
    %127 = vector.load %arg1[%c0_80, %c0_81, %c0_82] : memref<2x4x256xf32, #tpu.memory_space<vmem>>, vector<2x4x256xf32>
    %128 = vector.shape_cast %123 : vector<4x1xf32> to vector<1x4x1xf32>
    %129 = vector.broadcast %128 : vector<1x4x1xf32> to vector<2x4x256xf32>
    %130 = arith.mulf %127, %129 : vector<2x4x256xf32>
    %131 = vector.shape_cast %126 : vector<4x1xf32> to vector<1x4x1xf32>
    %132 = vector.broadcast %131 : vector<1x4x1xf32> to vector<2x4x256xf32>
    %133 = arith.addf %130, %132 : vector<2x4x256xf32>
    %c0_83 = arith.constant 0 : index
    %c0_84 = arith.constant 0 : index
    %c0_85 = arith.constant 0 : index
    %134 = vector.load %arg4[%c0_83, %c0_84, %c0_85] : memref<2x4x256xf32, #tpu.memory_space<vmem>>, vector<2x4x256xf32>
    tpu.vector_store %arg4[%c0_83, %c0_84, %c0_85], %133 {strides = array<i32>} : memref<2x4x256xf32, #tpu.memory_space<vmem>>, vector<2x4x256xf32>,
    return
  }
  func.func @transform_0(%arg0: i32) -> (i32, i32, i32) {
    %c0_i32 = arith.constant 0 : i32
    %c0_i32_0 = arith.constant 0 : i32
    %c0_i32_1 = arith.constant 0 : i32
    return %c0_i32, %arg0, %c0_i32_0 : i32, i32, i32
  }
  func.func @transform_1(%arg0: i32) -> (i32, i32) {
    %c0_i32 = arith.constant 0 : i32
    %c0_i32_0 = arith.constant 0 : i32
    return %arg0, %c0_i32 : i32, i32
  }
  func.func @transform_2(%arg0: i32) -> (i32, i32) {
    %c0_i32 = arith.constant 0 : i32
    %c0_i32_0 = arith.constant 0 : i32
    return %arg0, %c0_i32 : i32, i32
  }
  func.func @transform_3(%arg0: i32) -> (i32, i32, i32) {
    %c0_i32 = arith.constant 0 : i32
    %c0_i32_0 = arith.constant 0 : i32
    %c0_i32_1 = arith.constant 0 : i32
    return %c0_i32, %arg0, %c0_i32_0 : i32, i32, i32
  }
  func.func @transform_4(%arg0: i32) -> (i32, i32) {
    %c0_i32 = arith.constant 0 : i32
    %c0_i32_0 = arith.constant 0 : i32
    return %arg0, %c0_i32 : i32, i32
  }
  func.func @transform_5(%arg0: i32) -> (i32, i32) {
    %c0_i32 = arith.constant 0 : i32
    %c0_i32_0 = arith.constant 0 : i32
    return %arg0, %c0_i32 : i32, i32
  }
}

</mosaic_0001>

<llo_original>
// kernel: tpu_custom_call.1
$region0: #{tpu_custom_call.1}
  #allocation0 [shape = 'u32[]', space=smem, size = 0x4, offset = 0x4, fixed_abs, tag = 'smem constant byte address 0x4 - core index']
  #allocation1 [shape = 'u32[144,128]{1,0:T(1,128)}', space=vmem, size = 0x12000, scoped, tag = 'internal scratch']
  %s0 = inlined_call_operand.hbm [shape: f32[2,4,256], index: 0, kind: input, shape index: {}]
  %s1 = inlined_call_operand.vmem [shape: f32[4,1], index: 1, kind: input, shape index: {}]
  %s2 = inlined_call_operand.vmem [shape: f32[4,1], index: 2, kind: input, shape index: {}]
  %s3 = inlined_call_operand.hbm [shape: f32[2,4,256], index: 3, kind: output, shape index: {0}]
  %s4 = inlined_call_operand.vmem [shape: f32[4,1], index: 4, kind: output, shape index: {1}]
  %s5 = inlined_call_operand.vmem [shape: f32[4,1], index: 5, kind: output, shape index: {2}]
  %6 = xla_tuple %s3, %s4, %s5
  %s7 = sld [smem:[#allocation0]]
  $region42: #{tpu_custom_call.1} parent=0
    _
  %s9 = ssub.s32 1, %s7
  %s10 = scalar_select 0, %s9, %s7
  $region1: #{tpu_custom_call.1} parent=0
    #allocation2 [shape = 'u8[8192]{0}', space=vmem, size = 0x2000, scoped, tag = 'input window, operand 0, single buffered']
    #allocation3 [shape = 's32[1]{0}', space=sflag, size = 0x4, scoped, tag = 'scoped memory for tpu_custom_call.1']
    #allocation4 [shape = 's32[1]{0}', space=sflag, size = 0x4, scoped, tag = 'scoped memory for tpu_custom_call.1']
    #allocation5 [shape = 'u8[8192]{0}', space=vmem, size = 0x2000, scoped, tag = 'output window, operand 0, single buffered']
    %11 = vsyncpa [#allocation3], 0
    %12 = vsyncpa [#allocation4], 0
    // Predicated region
    $region2: #{tpu_custom_call.1} parent=1 // pred_check
      _
    $region3: #{tpu_custom_call.1} parent=1 // pred_check_branch
      %14 = sbr.rel (0) target = $region5
    $region4: #{tpu_custom_call.1} parent=1 // pred_region
      %s16 = ssub.s32 256, 256
      %17 = vsyncadd [#allocation3], %s16
      %s18 = sshll.u32 [#allocation2], 4
      %s19 = int_to_ptr.vmem [resolvable:$true] %s18
      %24 = dma.hbm_to_vmem [thread:$0]  %s0, 256, %s19, [#allocation3], 128, 128, 8
    $region5: #{tpu_custom_call.1} parent=1 // pred_fallthru
      _
    // Predicated region
    $region6: #{tpu_custom_call.1} parent=1 // pred_check
      _
    $region7: #{tpu_custom_call.1} parent=1 // pred_check_branch
      %26 = sbr.rel (0) target = $region9
    $region8: #{tpu_custom_call.1} parent=1 // pred_region
      _
    $region9: #{tpu_custom_call.1} parent=1 // pred_fallthru
      _
    // Predicated region
    $region10: #{tpu_custom_call.1} parent=1 // pred_check
      _
    $region11: #{tpu_custom_call.1} parent=1 // pred_check_branch
      %28 = sbr.rel (0) target = $region13
    $region12: #{tpu_custom_call.1} parent=1 // pred_region
      _
    $region13: #{tpu_custom_call.1} parent=1 // pred_fallthru
      _
    // Predicated region
    $region14: #{tpu_custom_call.1} parent=1 // pred_check
      _
    $region15: #{tpu_custom_call.1} parent=1 // pred_check_branch
      %30 = sbr.rel (0) target = $region17
    $region16: #{tpu_custom_call.1} parent=1 // pred_region
      %31 = dma.done [#allocation3], 256
    $region17: #{tpu_custom_call.1} parent=1 // pred_fallthru
      _
    %v32 = vld [vmem:[#allocation2] sm:$0xf]
    %v33 = vld [vmem:[#allocation2 + $0x8] sm:$0xf]
    %vm34 = vcmask 257024
    %v35 = vsel %vm34, %v32, 0.0
    %36 = vadd.xlane.f32.xlu0 %v35
    %v37 = vpop.xlane.xlu0 %36
    %v38 = vsel %vm34, %v33, 0.0
    %39 = vadd.xlane.f32.xlu0 %v38
    %v40 = vpop.xlane.xlu0 %39
    %vm41 = vcmask 1043456
    %v42 = vsel %vm41, %v37, 0.0
    %v43 = vsel %vm41, %v40, 0.0
    %v44 = vadd.f32 %v42, %v43
    %v45 = vadd.f32 %v44, 0.0
    %v46 = vsel %vm34, %v32, -inf
    %47 = vmax.xlane.f32.xlu0 %v46
    %v48 = vpop.xlane.xlu0 %47
    %v49 = vsel %vm34, %v33, -inf
    %50 = vmax.xlane.f32.xlu0 %v49
    %v51 = vpop.xlane.xlu0 %50
    %v52 = vsel %vm41, %v48, 0.0
    %v53 = vsel %vm41, %v51, 0.0
    %v54 = vadd.f32 %v52, %v53
    %v55 = vadd.f32 %v54, 0.0
    %v56 = vsel %vm34, %v32, inf
    %57 = vmin.xlane.f32.xlu0 %v56
    %v58 = vpop.xlane.xlu0 %57
    %v59 = vsel %vm34, %v33, inf
    %60 = vmin.xlane.f32.xlu0 %v59
    %v61 = vpop.xlane.xlu0 %60
    %v62 = vsel %vm41, %v58, 0.0
    %v63 = vsel %vm41, %v61, 0.0
    %v64 = vadd.f32 %v62, %v63
    %v65 = vadd.f32 %v64, 0.0
    %68 = vrot.lane.b32.xlu0 %v32, 96
    %v69 = vpop.permute.xlu0 %68
    %70 = vrot.lane.b32.xlu0 %v33, 96
    %v71 = vpop.permute.xlu0 %70
    %v74 = vsel %vm34, %v69, 0.0
    %75 = vadd.xlane.f32.xlu0 %v74
    %v76 = vpop.xlane.xlu0 %75
    %v77 = vsel %vm34, %v71, 0.0
    %78 = vadd.xlane.f32.xlu0 %v77
    %v79 = vpop.xlane.xlu0 %78
    %v80 = vsel %vm41, %v76, 0.0
    %v81 = vsel %vm41, %v79, 0.0
    %v82 = vadd.f32 %v80, %v81
    %v83 = vadd.f32 %v45, %v82
    %vm84 = vcmask 519424
    %v85 = vsel %vm84, %v32, -inf
    %86 = vmax.xlane.f32.xlu0 %v85
    %v87 = vpop.xlane.xlu0 %86
    %v88 = vsel %vm84, %v33, -inf
    %89 = vmax.xlane.f32.xlu0 %v88
    %v90 = vpop.xlane.xlu0 %89
    %v91 = vsel %vm41, %v87, 0.0
    %v92 = vsel %vm41, %v90, 0.0
    %v93 = vadd.f32 %v91, %v92
    %v94 = vadd.f32 %v55, %v93
    %v95 = vsel %vm84, %v32, inf
    %96 = vmin.xlane.f32.xlu0 %v95
    %v97 = vpop.xlane.xlu0 %96
    %v98 = vsel %vm84, %v33, inf
    %99 = vmin.xlane.f32.xlu0 %v98
    %v100 = vpop.xlane.xlu0 %99
    %v101 = vsel %vm41, %v97, 0.0
    %v102 = vsel %vm41, %v100, 0.0
    %v103 = vadd.f32 %v101, %v102
    %v104 = vadd.f32 %v65, %v103
    %105 = vrot.lane.b32.xlu0 %v32, 64
    %v106 = vpop.permute.xlu0 %105
    %107 = vrot.lane.b32.xlu0 %v33, 64
    %v108 = vpop.permute.xlu0 %107
    %v111 = vsel %vm34, %v106, 0.0
    %112 = vadd.xlane.f32.xlu0 %v111
    %v113 = vpop.xlane.xlu0 %112
    %v114 = vsel %vm34, %v108, 0.0
    %115 = vadd.xlane.f32.xlu0 %v114
    %v116 = vpop.xlane.xlu0 %115
    %v117 = vsel %vm41, %v113, 0.0
    %v118 = vsel %vm41, %v116, 0.0
    %v119 = vadd.f32 %v117, %v118
    %v120 = vadd.f32 %v83, %v119
    %vm121 = vcmask 781824
    %v122 = vsel %vm121, %v32, -inf
    %123 = vmax.xlane.f32.xlu0 %v122
    %v124 = vpop.xlane.xlu0 %123
    %v125 = vsel %vm121, %v33, -inf
    %126 = vmax.xlane.f32.xlu0 %v125
    %v127 = vpop.xlane.xlu0 %126
    %v128 = vsel %vm41, %v124, 0.0
    %v129 = vsel %vm41, %v127, 0.0
    %v130 = vadd.f32 %v128, %v129
    %v131 = vadd.f32 %v94, %v130
    %v132 = vsel %vm121, %v32, inf
    %133 = vmin.xlane.f32.xlu0 %v132
    %v134 = vpop.xlane.xlu0 %133
    %v135 = vsel %vm121, %v33, inf
    %136 = vmin.xlane.f32.xlu0 %v135
    %v137 = vpop.xlane.xlu0 %136
    %v138 = vsel %vm41, %v134, 0.0
    %v139 = vsel %vm41, %v137, 0.0
    %v140 = vadd.f32 %v138, %v139
    %v141 = vadd.f32 %v104, %v140
    %142 = vrot.lane.b32.xlu0 %v32, 32
    %v143 = vpop.permute.xlu0 %142
    %144 = vrot.lane.b32.xlu0 %v33, 32
    %v145 = vpop.permute.xlu0 %144
    %v148 = vsel %vm34, %v143, 0.0
    %149 = vadd.xlane.f32.xlu0 %v148
    %v150 = vpop.xlane.xlu0 %149
    %v151 = vsel %vm34, %v145, 0.0
    %152 = vadd.xlane.f32.xlu0 %v151
    %v153 = vpop.xlane.xlu0 %152
    %v154 = vsel %vm41, %v150, 0.0
    %v155 = vsel %vm41, %v153, 0.0
    %v156 = vadd.f32 %v154, %v155
    %v157 = vadd.f32 %v120, %v156
    %vm158 = vcmask 1044224
    %v159 = vsel %vm158, %v32, -inf
    %160 = vmax.xlane.f32.xlu0 %v159
    %v161 = vpop.xlane.xlu0 %160
    %v162 = vsel %vm158, %v33, -inf
    %163 = vmax.xlane.f32.xlu0 %v162
    %v164 = vpop.xlane.xlu0 %163
    %v165 = vsel %vm41, %v161, 0.0
    %v166 = vsel %vm41, %v164, 0.0
    %v167 = vadd.f32 %v165, %v166
    %v168 = vadd.f32 %v131, %v167
    %v169 = vsel %vm158, %v32, inf
    %170 = vmin.xlane.f32.xlu0 %v169
    %v171 = vpop.xlane.xlu0 %170
    %v172 = vsel %vm158, %v33, inf
    %173 = vmin.xlane.f32.xlu0 %v172
    %v174 = vpop.xlane.xlu0 %173
    %v175 = vsel %vm41, %v171, 0.0
    %v176 = vsel %vm41, %v174, 0.0
    %v177 = vadd.f32 %v175, %v176
    %v178 = vadd.f32 %v141, %v177
    %v179 = vld [vmem:[#allocation2 + $0x4] sm:$0xf]
    %v180 = vld [vmem:[#allocation2 + $0xc] sm:$0xf]
    %v181 = vsel %vm34, %v179, 0.0
    %182 = vadd.xlane.f32.xlu0 %v181
    %v183 = vpop.xlane.xlu0 %182
    %v184 = vsel %vm34, %v180, 0.0
    %185 = vadd.xlane.f32.xlu0 %v184
    %v186 = vpop.xlane.xlu0 %185
    %v187 = vsel %vm41, %v183, 0.0
    %v188 = vsel %vm41, %v186, 0.0
    %v189 = vadd.f32 %v187, %v188
    %v190 = vadd.f32 %v157, %v189
    %v191 = vsel %vm34, %v179, -inf
    %192 = vmax.xlane.f32.xlu0 %v191
    %v193 = vpop.xlane.xlu0 %192
    %v194 = vsel %vm34, %v180, -inf
    %195 = vmax.xlane.f32.xlu0 %v194
    %v196 = vpop.xlane.xlu0 %195
    %v197 = vsel %vm41, %v193, 0.0
    %v198 = vsel %vm41, %v196, 0.0
    %v199 = vadd.f32 %v197, %v198
    %v200 = vadd.f32 %v168, %v199
    %v201 = vsel %vm34, %v179, inf
    %202 = vmin.xlane.f32.xlu0 %v201
    %v203 = vpop.xlane.xlu0 %202
    %v204 = vsel %vm34, %v180, inf
    %205 = vmin.xlane.f32.xlu0 %v204
    %v206 = vpop.xlane.xlu0 %205
    %v207 = vsel %vm41, %v203, 0.0
    %v208 = vsel %vm41, %v206, 0.0
    %v209 = vadd.f32 %v207, %v208
    %v210 = vadd.f32 %v178, %v209
    %213 = vrot.lane.b32.xlu0 %v179, 96
    %v214 = vpop.permute.xlu0 %213
    %215 = vrot.lane.b32.xlu0 %v180, 96
    %v216 = vpop.permute.xlu0 %215
    %v219 = vsel %vm34, %v214, 0.0
    %220 = vadd.xlane.f32.xlu0 %v219
    %v221 = vpop.xlane.xlu0 %220
    %v222 = vsel %vm34, %v216, 0.0
    %223 = vadd.xlane.f32.xlu0 %v222
    %v224 = vpop.xlane.xlu0 %223
    %v225 = vsel %vm41, %v221, 0.0
    %v226 = vsel %vm41, %v224, 0.0
    %v227 = vadd.f32 %v225, %v226
    %v228 = vadd.f32 %v190, %v227
    %v229 = vsel %vm84, %v179, -inf
    %230 = vmax.xlane.f32.xlu0 %v229
    %v231 = vpop.xlane.xlu0 %230
    %v232 = vsel %vm84, %v180, -inf
    %233 = vmax.xlane.f32.xlu0 %v232
    %v234 = vpop.xlane.xlu0 %233
    %v235 = vsel %vm41, %v231, 0.0
    %v236 = vsel %vm41, %v234, 0.0
    %v237 = vadd.f32 %v235, %v236
    %v238 = vadd.f32 %v200, %v237
    %v239 = vsel %vm84, %v179, inf
    %240 = vmin.xlane.f32.xlu0 %v239
    %v241 = vpop.xlane.xlu0 %240
    %v242 = vsel %vm84, %v180, inf
    %243 = vmin.xlane.f32.xlu0 %v242
    %v244 = vpop.xlane.xlu0 %243
    %v245 = vsel %vm41, %v241, 0.0
    %v246 = vsel %vm41, %v244, 0.0
    %v247 = vadd.f32 %v245, %v246
    %v248 = vadd.f32 %v210, %v247
    %249 = vrot.lane.b32.xlu0 %v179, 64
    %v250 = vpop.permute.xlu0 %249
    %251 = vrot.lane.b32.xlu0 %v180, 64
    %v252 = vpop.permute.xlu0 %251
    %v255 = vsel %vm34, %v250, 0.0
    %256 = vadd.xlane.f32.xlu0 %v255
    %v257 = vpop.xlane.xlu0 %256
    %v258 = vsel %vm34, %v252, 0.0
    %259 = vadd.xlane.f32.xlu0 %v258
    %v260 = vpop.xlane.xlu0 %259
    %v261 = vsel %vm41, %v257, 0.0
    %v262 = vsel %vm41, %v260, 0.0
    %v263 = vadd.f32 %v261, %v262
    %v264 = vadd.f32 %v228, %v263
    %v265 = vsel %vm121, %v179, -inf
    %266 = vmax.xlane.f32.xlu0 %v265
    %v267 = vpop.xlane.xlu0 %266
    %v268 = vsel %vm121, %v180, -inf
    %269 = vmax.xlane.f32.xlu0 %v268
    %v270 = vpop.xlane.xlu0 %269
    %v271 = vsel %vm41, %v267, 0.0
    %v272 = vsel %vm41, %v270, 0.0
    %v273 = vadd.f32 %v271, %v272
    %v274 = vadd.f32 %v238, %v273
    %v275 = vsel %vm121, %v179, inf
    %276 = vmin.xlane.f32.xlu0 %v275
    %v277 = vpop.xlane.xlu0 %276
    %v278 = vsel %vm121, %v180, inf
    %279 = vmin.xlane.f32.xlu0 %v278
    %v280 = vpop.xlane.xlu0 %279
    %v281 = vsel %vm41, %v277, 0.0
    %v282 = vsel %vm41, %v280, 0.0
    %v283 = vadd.f32 %v281, %v282
    %v284 = vadd.f32 %v248, %v283
    %285 = vrot.lane.b32.xlu0 %v179, 32
    %v286 = vpop.permute.xlu0 %285
    %287 = vrot.lane.b32.xlu0 %v180, 32
    %v288 = vpop.permute.xlu0 %287
    %v291 = vsel %vm34, %v286, 0.0
    %292 = vadd.xlane.f32.xlu0 %v291
    %v293 = vpop.xlane.xlu0 %292
    %v294 = vsel %vm34, %v288, 0.0
    %295 = vadd.xlane.f32.xlu0 %v294
    %v296 = vpop.xlane.xlu0 %295
    %v297 = vsel %vm41, %v293, 0.0
    %v298 = vsel %vm41, %v296, 0.0
    %v299 = vadd.f32 %v297, %v298
    %v300 = vadd.f32 %v264, %v299
    %v301 = vsel %vm158, %v179, -inf
    %302 = vmax.xlane.f32.xlu0 %v301
    %v303 = vpop.xlane.xlu0 %302
    %v304 = vsel %vm158, %v180, -inf
    %305 = vmax.xlane.f32.xlu0 %v304
    %v306 = vpop.xlane.xlu0 %305
    %v307 = vsel %vm41, %v303, 0.0
    %v308 = vsel %vm41, %v306, 0.0
    %v309 = vadd.f32 %v307, %v308
    %v310 = vadd.f32 %v274, %v309
    %v311 = vsel %vm158, %v179, inf
    %312 = vmin.xlane.f32.xlu0 %v311
    %v313 = vpop.xlane.xlu0 %312
    %v314 = vsel %vm158, %v180, inf
    %315 = vmin.xlane.f32.xlu0 %v314
    %v316 = vpop.xlane.xlu0 %315
    %v317 = vsel %vm41, %v313, 0.0
    %v318 = vsel %vm41, %v316, 0.0
    %v319 = vadd.f32 %v317, %v318
    %v320 = vadd.f32 %v284, %v319
    %v321 = vmul.f32 %v300, 0.001953125
    %v322 = vmul.f32 %v310, 0.0625
    %v323 = vmul.f32 %v320, 0.0625
    %v324 = vsub.f32 %v322, %v323
    %v325 = vmul.f32 %v324, 0.2051864
    %v326 = vadd.f32 %v325, 1e-05
    %v327 = vrcp.pop %v326
    %v328 = vmul.f32 1.0, %v327
    %vm329 = vcmask 3072
    %330 = vst.msk [vmem:[%s4] sm:$0xf] %vm329, %v321
    %331 = vst.msk [vmem:[%s5] sm:$0xf] %vm329, %v328
    %v332 = vld [vmem:[%s1] sm:$0xf]
    %v333 = vmul.f32 %v328, %v332
    %v334 = vld [vmem:[%s2] sm:$0xf]
    %v335 = vmul.f32 %v321, %v333
    %v336 = vsub.f32 %v334, %v335
    %v337 = vld [vmem:[#allocation2] sm:$0xff]
    %v338 = vld [vmem:[#allocation2 + $0x8] sm:$0xff]
    %340 = vset.pattern.permute.xlu0 0
    %341 = vperm.xlu0 %340, %v333
    %v342 = vpop.permute.xlu0 %341
    %v344 = vunpack.c.l.s4 839922192
    %v345 = vunpack.c.0.s8 %v344
    %v346 = vlaneseq
    %v347 = vshrl.u32 %v346, 7
    %v348 = vsub.s32 %v345, %v347
    %v349 = vrot.slane %v342, %v348
    %v351 = vmul.f32 %v337, %v349
    %v352 = vmul.f32 %v338, %v349
    %354 = vset.pattern.permute.xlu0 0
    %355 = vperm.xlu0 %354, %v336
    %v356 = vpop.permute.xlu0 %355
    %v358 = vunpack.c.l.s4 839922192
    %v359 = vunpack.c.0.s8 %v358
    %v360 = vlaneseq
    %v361 = vshrl.u32 %v360, 7
    %v362 = vsub.s32 %v359, %v361
    %v363 = vrot.slane %v356, %v362
    %v365 = vadd.f32 %v351, %v363
    %v366 = vadd.f32 %v352, %v363
    %367 = vst [vmem:[#allocation5] sm:$0xff] %v365
    %368 = vst [vmem:[#allocation5 + $0x8] sm:$0xff] %v366
    // Predicated region
    $region18: #{tpu_custom_call.1} parent=1 // pred_check
      _
    $region19: #{tpu_custom_call.1} parent=1 // pred_check_branch
      %370 = sbr.rel (0) target = $region21
    $region20: #{tpu_custom_call.1} parent=1 // pred_region
      %s372 = ssub.s32 256, 256
      %373 = vsyncadd [#allocation4], %s372
      %s374 = sshll.u32 [#allocation5], 4
      %s375 = int_to_ptr.vmem [resolvable:$true] %s374
      %380 = dma.vmem_to_hbm [thread:$0]  %s375, 256, %s3, [#allocation4], 128, 128, 8
    $region21: #{tpu_custom_call.1} parent=1 // pred_fallthru
      _
    // Predicated region
    $region22: #{tpu_custom_call.1} parent=1 // pred_check
      _
    $region23: #{tpu_custom_call.1} parent=1 // pred_check_branch
      %382 = sbr.rel (0) target = $region25
    $region24: #{tpu_custom_call.1} parent=1 // pred_region
      _
    $region25: #{tpu_custom_call.1} parent=1 // pred_fallthru
      _
    // Predicated region
    $region26: #{tpu_custom_call.1} parent=1 // pred_check
      _
    $region27: #{tpu_custom_call.1} parent=1 // pred_check_branch
      %384 = sbr.rel (0) target = $region29
    $region28: #{tpu_custom_call.1} parent=1 // pred_region
      _
    $region29: #{tpu_custom_call.1} parent=1 // pred_fallthru
      _
    // Predicated region
    $region30: #{tpu_custom_call.1} parent=1 // pred_check
      _
    $region31: #{tpu_custom_call.1} parent=1 // pred_check_branch
      %386 = sbr.rel (0) target = $region33
    $region32: #{tpu_custom_call.1} parent=1 // pred_region
      %387 = dma.done [#allocation4], 256
    $region33: #{tpu_custom_call.1} parent=1 // pred_fallthru
      _
    // Predicated region
    $region34: #{tpu_custom_call.1} parent=1 // pred_check
      _
    $region35: #{tpu_custom_call.1} parent=1 // pred_check_branch
      %389 = sbr.rel (0) target = $region37
    $region36: #{tpu_custom_call.1} parent=1 // pred_region
      _
    $region37: #{tpu_custom_call.1} parent=1 // pred_fallthru
      _
    // Predicated region
    $region38: #{tpu_custom_call.1} parent=1 // pred_check
      _
    $region39: #{tpu_custom_call.1} parent=1 // pred_check_branch
      %391 = sbr.rel (0) target = $region41
    $region40: #{tpu_custom_call.1} parent=1 // pred_region
      _
    $region41: #{tpu_custom_call.1} parent=1 // pred_fallthru
      _
    %392 = vsyncpa [#allocation3], 1
    %393 = vsyncpa [#allocation4], 1

</llo_original>
